<compile_context>
chip_gen: v7x
topology: tpu7x:2x2x1
jax: 0.10.0
libtpu: 0.0.40
codegen_flags: <defaults>
</compile_context>

<pallas_src>
import math

import jax
import jax.numpy as jnp
from jax.experimental import pallas as pl
from jax.experimental.pallas import tpu as pltpu


def _critic_kernel(sa_ref, w1_ref, b1_ref, w2_ref, b2_ref, w3_ref, b3_ref, out_ref):
    # sa_ref:  [B, D_in]
    # w1_ref:  [D_in, E*H],  b1_ref: [1, E*H]
    # w2_ref:  [E*H, E*H],   b2_ref: [1, E*H]   (block-diagonal over ensemble)
    # w3_ref:  [E*H, E],     b3_ref: [1, E]     (block-diagonal over ensemble)
    # out_ref: [B, E]
    x = sa_ref[...]                                                       # [B, D_in]

    h1 = jnp.dot(x, w1_ref[...], preferred_element_type=jnp.float32)      # [B, E*H]
    h1 = jnp.maximum(h1 + b1_ref[...], 0.0)

    h2 = jnp.dot(h1, w2_ref[...], preferred_element_type=jnp.float32)     # [B, E*H]
    h2 = jnp.maximum(h2 + b2_ref[...], 0.0)

    q = jnp.dot(h2, w3_ref[...], preferred_element_type=jnp.float32)      # [B, E]
    out_ref[...] = (q + b3_ref[...]).astype(out_ref.dtype)


def _block_diag(w):
    """[E, d_in, d_out] -> [E*d_in, E*d_out] with block e on the diagonal."""
    E, din, dout = w.shape
    eye = jnp.eye(E, dtype=w.dtype)
    # bd[e*din + i, f*dout + o] = w[e, i, o] * (e == f)
    return jnp.einsum("eio,ef->eifo", w, eye).reshape(E * din, E * dout)


def pack_params(params):
    """One-time wrapper-side layout packing of the ensemble weights."""
    w1, b1 = params["w1"], params["b1"]   # [E, D_in, H], [E, 1, H]
    w2, b2 = params["w2"], params["b2"]   # [E, H, H],    [E, 1, H]
    w3, b3 = params["w3"], params["b3"]   # [E, H, 1],    [E, 1, 1]
    E, d_in, H = w1.shape
    return {
        "w1": jnp.transpose(w1, (1, 0, 2)).reshape(d_in, E * H),   # [D_in, E*H]
        "b1": b1.reshape(1, E * H),
        "w2": _block_diag(w2),                                     # [E*H, E*H]
        "b2": b2.reshape(1, E * H),
        "w3": _block_diag(w3),                                     # [E*H, E]
        "b3": b3.reshape(1, E),
        "E": E,
        "H": H,
    }


def vectorized_critic_forward(state, action, packed):
    """Pallas implementation of VectorizedCritic.forward.

    state:  [B, state_dim], action: [B, action_dim]
    packed: output of pack_params()
    returns q_values [E, B]
    """
    sa = jnp.concatenate([state, action], axis=-1)        # [B, D_in]
    B = sa.shape[0]
    E = packed["E"]

    vmem = pl.BlockSpec(memory_space=pltpu.MemorySpace.VMEM)
    out = pl.pallas_call(
        _critic_kernel,
        out_shape=jax.ShapeDtypeStruct((B, E), jnp.float32),
        in_specs=[vmem] * 7,
        out_specs=vmem,
    )(sa, packed["w1"], packed["b1"], packed["w2"], packed["b2"],
      packed["w3"], packed["b3"])

    # Critic-ensemble axis first (as in the PyTorch module), plus the squeeze(-1).
    return out.T                                          # [E, B]


def init_params(key, state_dim, action_dim, hidden_dim, num_critics):
    """Deterministic synthetic init mirroring VectorizedLinear shapes.

    Hidden layers: kaiming-uniform-style weights, bias = 0.1 (as in the module).
    Final layer:   uniform(-0.003, 0.003) for weight and bias.
    """
    d_in = state_dim + action_dim
    k1, k2, k3, k4 = jax.random.split(key, 4)

    def kaiming_uniform(k, shape, fan_in):
        bound = 1.0 / math.sqrt(fan_in)
        return jax.random.uniform(k, shape, jnp.float32, -bound, bound)

    return {
        "w1": kaiming_uniform(k1, (num_critics, d_in, hidden_dim), d_in),
        "b1": jnp.full((num_critics, 1, hidden_dim), 0.1, jnp.float32),
        "w2": kaiming_uniform(k2, (num_critics, hidden_dim, hidden_dim), hidden_dim),
        "b2": jnp.full((num_critics, 1, hidden_dim), 0.1, jnp.float32),
        "w3": jax.random.uniform(k3, (num_critics, hidden_dim, 1), jnp.float32,
                                 -0.003, 0.003),
        "b3": jax.random.uniform(k4, (num_critics, 1, 1), jnp.float32,
                                 -0.003, 0.003),
    }


def reference_forward(state, action, params):
    """Pure-JAX reference matching the PyTorch forward semantics."""
    sa = jnp.concatenate([state, action], axis=-1)                       # [B, D_in]
    x = jnp.broadcast_to(sa[None], (params["w1"].shape[0],) + sa.shape)  # [E, B, D_in]
    h1 = jax.nn.relu(jnp.einsum("ebi,eio->ebo", x, params["w1"]) + params["b1"])
    h2 = jax.nn.relu(jnp.einsum("ebi,eio->ebo", h1, params["w2"]) + params["b2"])
    q = jnp.einsum("ebi,eio->ebo", h2, params["w3"]) + params["b3"]      # [E, B, 1]
    return q[..., 0]                                                     # [E, B]


if __name__ == "__main__":
    # Small shapes consistent with the module's forward.
    batch = 8
    state_dim = 8
    action_dim = 4
    hidden_dim = 32
    num_critics = 10

    key = jax.random.PRNGKey(0)
    k_s, k_a, k_p = jax.random.split(key, 3)

    state = jax.random.normal(k_s, (batch, state_dim), jnp.float32)
    action = jax.random.normal(k_a, (batch, action_dim), jnp.float32)
    params = init_params(k_p, state_dim, action_dim, hidden_dim, num_critics)

    packed = pack_params(params)
    q = vectorized_critic_forward(state, action, packed)
    q = jax.block_until_ready(q)

    q_ref = reference_forward(state, action, params)
    assert q.shape == (num_critics, batch), q.shape
    assert jnp.allclose(q, q_ref, atol=1e-5, rtol=1e-5), "mismatch vs reference"

    print("KERNEL_OK")
</pallas_src>

<mosaic_0001>
module attributes {stable_mosaic.version = 11 : i64} {
  func.func @_critic_kernel(%arg0: memref<8x12xf32, #tpu.memory_space<vmem>>, %arg1: memref<12x320xf32, #tpu.memory_space<vmem>>, %arg2: memref<1x320xf32, #tpu.memory_space<vmem>>, %arg3: memref<320x320xf32, #tpu.memory_space<vmem>>, %arg4: memref<1x320xf32, #tpu.memory_space<vmem>>, %arg5: memref<320x10xf32, #tpu.memory_space<vmem>>, %arg6: memref<1x10xf32, #tpu.memory_space<vmem>>, %arg7: memref<8x10xf32, #tpu.memory_space<vmem>>) attributes {dimension_semantics = [], scalar_prefetch = 0 : i64, scratch_operands = 0 : i64, tpu.core_type = #tpu.core_type<tc>} {
    %c0 = arith.constant 0 : index
    %c0_0 = arith.constant 0 : index
    %0 = vector.load %arg0[%c0, %c0_0] : memref<8x12xf32, #tpu.memory_space<vmem>>, vector<8x12xf32>
    %c0_1 = arith.constant 0 : index
    %c0_2 = arith.constant 0 : index
    %1 = vector.load %arg1[%c0_1, %c0_2] : memref<12x320xf32, #tpu.memory_space<vmem>>, vector<12x320xf32>
    %cst = arith.constant dense<0.000000e+00> : vector<8x320xf32>
    %2 = tpu.matmul %0, %1, %cst {dimension_numbers = #tpu.dot_dimension_numbers<[1], [0], [0], [1], [0, 0, 1, 1], [], []>} : vector<8x12xf32>, vector<12x320xf32>, vector<8x320xf32> -> vector<8x320xf32>
    %c0_3 = arith.constant 0 : index
    %c0_4 = arith.constant 0 : index
    %3 = vector.load %arg2[%c0_3, %c0_4] : memref<1x320xf32, #tpu.memory_space<vmem>>, vector<1x320xf32>
    %4 = vector.broadcast %3 : vector<1x320xf32> to vector<8x320xf32>
    %5 = arith.addf %2, %4 : vector<8x320xf32>
    %cst_5 = arith.constant 0.000000e+00 : f32
    %6 = vector.broadcast %cst_5 : f32 to vector<8x320xf32>
    %7 = arith.maximumf %5, %6 : vector<8x320xf32>
    %c0_6 = arith.constant 0 : index
    %c0_7 = arith.constant 0 : index
    %8 = vector.load %arg3[%c0_6, %c0_7] : memref<320x320xf32, #tpu.memory_space<vmem>>, vector<320x320xf32>
    %cst_8 = arith.constant dense<0.000000e+00> : vector<8x320xf32>
    %9 = tpu.matmul %7, %8, %cst_8 {dimension_numbers = #tpu.dot_dimension_numbers<[1], [0], [0], [1], [0, 0, 1, 1], [], []>} : vector<8x320xf32>, vector<320x320xf32>, vector<8x320xf32> -> vector<8x320xf32>
    %c0_9 = arith.constant 0 : index
    %c0_10 = arith.constant 0 : index
    %10 = vector.load %arg4[%c0_9, %c0_10] : memref<1x320xf32, #tpu.memory_space<vmem>>, vector<1x320xf32>
    %11 = vector.broadcast %10 : vector<1x320xf32> to vector<8x320xf32>
    %12 = arith.addf %9, %11 : vector<8x320xf32>
    %cst_11 = arith.constant 0.000000e+00 : f32
    %13 = vector.broadcast %cst_11 : f32 to vector<8x320xf32>
    %14 = arith.maximumf %12, %13 : vector<8x320xf32>
    %c0_12 = arith.constant 0 : index
    %c0_13 = arith.constant 0 : index
    %15 = vector.load %arg5[%c0_12, %c0_13] : memref<320x10xf32, #tpu.memory_space<vmem>>, vector<320x10xf32>
    %cst_14 = arith.constant dense<0.000000e+00> : vector<8x10xf32>
    %16 = tpu.matmul %14, %15, %cst_14 {dimension_numbers = #tpu.dot_dimension_numbers<[1], [0], [0], [1], [0, 0, 1, 1], [], []>} : vector<8x320xf32>, vector<320x10xf32>, vector<8x10xf32> -> vector<8x10xf32>
    %c0_15 = arith.constant 0 : index
    %c0_16 = arith.constant 0 : index
    %17 = vector.load %arg6[%c0_15, %c0_16] : memref<1x10xf32, #tpu.memory_space<vmem>>, vector<1x10xf32>
    %18 = vector.broadcast %17 : vector<1x10xf32> to vector<8x10xf32>
    %19 = arith.addf %16, %18 : vector<8x10xf32>
    %c0_17 = arith.constant 0 : index
    %c0_18 = arith.constant 0 : index
    %20 = vector.load %arg7[%c0_17, %c0_18] : memref<8x10xf32, #tpu.memory_space<vmem>>, vector<8x10xf32>
    tpu.vector_store %arg7[%c0_17, %c0_18], %19 {strides = array<i32>} : memref<8x10xf32, #tpu.memory_space<vmem>>, vector<8x10xf32>,
    return
  }
}

</mosaic_0001>

<llo_original>
// kernel: tpu_custom_call.1
$region0: #{tpu_custom_call.1}
  #allocation0 [shape = 'u32[]', space=smem, size = 0x4, offset = 0x4, fixed_abs, tag = 'smem constant byte address 0x4 - core index']
  #allocation1 [shape = 'u32[144,128]{1,0:T(1,128)}', space=vmem, size = 0x12000, scoped, tag = 'internal scratch']
  %s0 = inlined_call_operand.vmem [shape: f32[8,12], index: 0, kind: input, shape index: {}]
  %s1 = inlined_call_operand.vmem [shape: f32[12,320], index: 1, kind: input, shape index: {}]
  %s2 = inlined_call_operand.vmem [shape: f32[1,320], index: 2, kind: input, shape index: {}]
  %s3 = inlined_call_operand.hbm [shape: f32[320,320], index: 3, kind: input, shape index: {}]
  %s4 = inlined_call_operand.vmem [shape: f32[1,320], index: 4, kind: input, shape index: {}]
  %s5 = inlined_call_operand.vmem [shape: f32[320,10], index: 5, kind: input, shape index: {}]
  %s6 = inlined_call_operand.vmem [shape: f32[1,10], index: 6, kind: input, shape index: {}]
  %s7 = inlined_call_operand.hbm [shape: f32[8,10], index: 7, kind: output, shape index: {}]
  %s8 = sld [smem:[#allocation0]]
  $region42: #{tpu_custom_call.1} parent=0
    _
  %s10 = ssub.s32 1, %s8
  %s11 = scalar_select 0, %s10, %s8
  $region1: #{tpu_custom_call.1} parent=0
    #allocation2 [shape = 'u8[491520]{0}', space=vmem, size = 0x78000, scoped, tag = 'input window, operand 3, single buffered']
    #allocation3 [shape = 's32[1]{0}', space=sflag, size = 0x4, scoped, tag = 'scoped memory for tpu_custom_call.1']
    #allocation4 [shape = 's32[1]{0}', space=sflag, size = 0x4, scoped, tag = 'scoped memory for tpu_custom_call.1']
    #allocation5 [shape = 'u8[4096]{0}', space=vmem, size = 0x1000, scoped, tag = 'output window, operand 0, single buffered']
    %12 = vsyncpa [#allocation3], 0
    %13 = vsyncpa [#allocation4], 0
    // Predicated region
    $region2: #{tpu_custom_call.1} parent=1 // pred_check
      _
    $region3: #{tpu_custom_call.1} parent=1 // pred_check_branch
      %15 = sbr.rel (0) target = $region5
    $region4: #{tpu_custom_call.1} parent=1 // pred_region
      _
    $region5: #{tpu_custom_call.1} parent=1 // pred_fallthru
      _
    // Predicated region
    $region6: #{tpu_custom_call.1} parent=1 // pred_check
      _
    $region7: #{tpu_custom_call.1} parent=1 // pred_check_branch
      %17 = sbr.rel (0) target = $region9
    $region8: #{tpu_custom_call.1} parent=1 // pred_region
      _
    $region9: #{tpu_custom_call.1} parent=1 // pred_fallthru
      _
    // Predicated region
    $region10: #{tpu_custom_call.1} parent=1 // pred_check
      _
    $region11: #{tpu_custom_call.1} parent=1 // pred_check_branch
      %19 = sbr.rel (0) target = $region13
    $region12: #{tpu_custom_call.1} parent=1 // pred_region
      _
    $region13: #{tpu_custom_call.1} parent=1 // pred_fallthru
      _
    // Predicated region
    $region14: #{tpu_custom_call.1} parent=1 // pred_check
      _
    $region15: #{tpu_custom_call.1} parent=1 // pred_check_branch
      %21 = sbr.rel (0) target = $region17
    $region16: #{tpu_custom_call.1} parent=1 // pred_region
      %s23 = ssub.s32 15360, 15360
      %24 = vsyncadd [#allocation3], %s23
      %s25 = sshll.u32 [#allocation2], 4
      %s26 = int_to_ptr.vmem [resolvable:$true] %s25
      %31 = dma.hbm_to_vmem [thread:$0]  %s3, 15360, %s26, [#allocation3], 384, 384, 24
    $region17: #{tpu_custom_call.1} parent=1 // pred_fallthru
      _
    // Predicated region
    $region18: #{tpu_custom_call.1} parent=1 // pred_check
      _
    $region19: #{tpu_custom_call.1} parent=1 // pred_check_branch
      %33 = sbr.rel (0) target = $region21
    $region20: #{tpu_custom_call.1} parent=1 // pred_region
      _
    $region21: #{tpu_custom_call.1} parent=1 // pred_fallthru
      _
    // Predicated region
    $region22: #{tpu_custom_call.1} parent=1 // pred_check
      _
    $region23: #{tpu_custom_call.1} parent=1 // pred_check_branch
      %35 = sbr.rel (0) target = $region25
    $region24: #{tpu_custom_call.1} parent=1 // pred_region
      _
    $region25: #{tpu_custom_call.1} parent=1 // pred_fallthru
      _
    // Predicated region
    $region26: #{tpu_custom_call.1} parent=1 // pred_check
      _
    $region27: #{tpu_custom_call.1} parent=1 // pred_check_branch
      %37 = sbr.rel (0) target = $region29
    $region28: #{tpu_custom_call.1} parent=1 // pred_region
      _
    $region29: #{tpu_custom_call.1} parent=1 // pred_fallthru
      _
    // Predicated region
    $region30: #{tpu_custom_call.1} parent=1 // pred_check
      _
    $region31: #{tpu_custom_call.1} parent=1 // pred_check_branch
      %39 = sbr.rel (0) target = $region33
    $region32: #{tpu_custom_call.1} parent=1 // pred_region
      %40 = dma.done [#allocation3], 15360
    $region33: #{tpu_custom_call.1} parent=1 // pred_fallthru
      _
    %v41 = vld [vmem:[%s0] sm:$0xff]
    %v42 = vld [vmem:[%s1] sm:$0xff]
    %v43 = vld [vmem:[%s1 + $0x8] sm:$0xff]
    %v44 = vld [vmem:[%s1 + $0x10] sm:$0xff]
    %v45 = vld [vmem:[%s1 + $0x18] sm:$0xf]
    %v46 = vld [vmem:[%s1 + $0x20] sm:$0xf]
    %v47 = vld [vmem:[%s1 + $0x28] sm:$0xf]
    %v48 = vld [vmem:[%s2] sm:$0x7]
    %v50 = vlaneseq
    %v51 = vshrl.u32 %v50, 7
    %v52 = vsub.s32 0, %v51
    %v53 = vrot.slane %v48, %v52
    %v54 = vlaneseq
    %v55 = vshrl.u32 %v54, 7
    %v56 = vsub.s32 1, %v55
    %v57 = vrot.slane %v48, %v56
    %v58 = vlaneseq
    %v59 = vshrl.u32 %v58, 7
    %v60 = vsub.s32 2, %v59
    %v61 = vrot.slane %v48, %v60
    %vm65 = vcmask 97280
    %v67 = vsel %vm65, %v41, 0
    %vm69 = vcmask 1043456
    %v71 = vsel %vm69, %v45, 0
    %v74 = vsel %vm69, %v46, 0
    %v77 = vsel %vm69, %v47, 0
    %79 = vmatprep.subr.mxu0 %v43
    %80 = vmatpush1.msra.mxu0 %v42
    %81 = vmatprep.subr.mxu0 %v74
    %82 = vmatpush1.msra.mxu0 %v71
    %83 = vmatprep.subr.mxu0 0.0
    %84 = vmatpush1.msra.mxu0 0.0
    %85 = vmatprep.subr.mxu0 0.0
    %86 = vmatpush1.msra.mxu0 0.0
    %87 = vmatprep.subr.mxu0 0.0
    %88 = vmatpush1.msra.mxu0 0.0
    %89 = vmatprep.subr.mxu0 0.0
    %90 = vmatpush1.msra.mxu0 0.0
    %91 = vmatprep.subr.mxu0 0.0
    %92 = vmatpush1.msra.mxu0 0.0
    %93 = vmatprep.subr.mxu0 0.0
    %94 = vmatpush1.msra.mxu0 0.0
    %95 = vmatprep.subr.mxu0 0.0
    %96 = vmatpush1.msra.mxu0 0.0
    %97 = vmatprep.subr.mxu0 0.0
    %98 = vmatpush1.msra.mxu0 0.0
    %99 = vmatprep.subr.mxu0 0.0
    %100 = vmatpush1.msra.mxu0 0.0
    %101 = vmatprep.subr.mxu0 0.0
    %102 = vmatpush1.msra.mxu0 0.0
    %103 = vmatprep.subr.mxu0 0.0
    %104 = vmatpush1.msra.mxu0 0.0
    %105 = vmatprep.subr.mxu0 0.0
    %106 = vmatpush1.msra.mxu0 0.0
    %107 = vmatprep.subr.mxu0 0.0
    %108 = vmatpush1.msra.mxu0 0.0
    %109 = vmatprep.subr.mxu0 0.0
    %110 = vmatpush1.msra.mxu0 0.0
    %111 = vmatprep.subr.mxu0 0.0
    %112 = vmatpush1.msra.mxu0 0.0
    %113 = vmatprep.subr.mxu0 0.0
    %114 = vmatpush1.msra.mxu0 0.0
    %115 = vmatprep.subr.mxu0 0.0
    %116 = vmatpush1.msra.mxu0 0.0
    %117 = vmatprep.subr.mxu0 0.0
    %118 = vmatpush1.msra.mxu0 0.0
    %119 = vmatprep.subr.mxu0 0.0
    %120 = vmatpush1.msra.mxu0 0.0
    %121 = vmatprep.subr.mxu0 0.0
    %122 = vmatpush1.msra.mxu0 0.0
    %123 = vmatprep.subr.mxu0 0.0
    %124 = vmatpush1.msra.mxu0 0.0
    %125 = vmatprep.subr.mxu0 0.0
    %126 = vmatpush1.msra.mxu0 0.0
    %127 = vmatprep.subr.mxu0 0.0
    %128 = vmatpush1.msra.mxu0 0.0
    %129 = vmatprep.subr.mxu0 0.0
    %130 = vmatpush1.msra.mxu0 0.0
    %131 = vmatprep.subr.mxu0 0.0
    %132 = vmatpush1.msra.mxu0 0.0
    %133 = vmatprep.subr.mxu0 0.0
    %134 = vmatpush1.msra.mxu0 0.0
    %135 = vmatprep.subr.mxu0 0.0
    %136 = vmatpush1.msra.mxu0 0.0
    %137 = vmatprep.subr.mxu0 0.0
    %138 = vmatpush1.msra.mxu0 0.0
    %139 = vmatprep.subr.mxu0 0.0
    %140 = vmatpush1.msra.mxu0 0.0
    %141 = vmatprep.subr.mxu0 0.0
    %142 = vmatpush1.msra.mxu0 0.0
    %143 = vmatprep.mubr.f32.mxu0 0.0
    %144 = vmatmul.mubr.f32.gmra.mrb[0].mxu0 %v67
    %v145 = vpop.f32.mrb[0].mxu0
    %v146 = vadd.f32 %v53, %v145
    %v147 = vpop.f32.mrb[0].mxu0
    %v148 = vadd.f32 %v57, %v147
    %149 = vdwg.mxu0
    %150 = vmatprep.subr.mxu0 0.0
    %151 = vmatpush1.msra.mxu0 %v44
    %152 = vmatprep.subr.mxu0 0.0
    %153 = vmatpush1.msra.mxu0 %v77
    %154 = vmatprep.subr.mxu0 0.0
    %155 = vmatpush1.msra.mxu0 0.0
    %156 = vmatprep.subr.mxu0 0.0
    %157 = vmatpush1.msra.mxu0 0.0
    %158 = vmatprep.subr.mxu0 0.0
    %159 = vmatpush1.msra.mxu0 0.0
    %160 = vmatprep.subr.mxu0 0.0
    %161 = vmatpush1.msra.mxu0 0.0
    %162 = vmatprep.subr.mxu0 0.0
    %163 = vmatpush1.msra.mxu0 0.0
    %164 = vmatprep.subr.mxu0 0.0
    %165 = vmatpush1.msra.mxu0 0.0
    %166 = vmatprep.subr.mxu0 0.0
    %167 = vmatpush1.msra.mxu0 0.0
    %168 = vmatprep.subr.mxu0 0.0
    %169 = vmatpush1.msra.mxu0 0.0
    %170 = vmatprep.subr.mxu0 0.0
    %171 = vmatpush1.msra.mxu0 0.0
    %172 = vmatprep.subr.mxu0 0.0
    %173 = vmatpush1.msra.mxu0 0.0
    %174 = vmatprep.subr.mxu0 0.0
    %175 = vmatpush1.msra.mxu0 0.0
    %176 = vmatprep.subr.mxu0 0.0
    %177 = vmatpush1.msra.mxu0 0.0
    %178 = vmatprep.subr.mxu0 0.0
    %179 = vmatpush1.msra.mxu0 0.0
    %180 = vmatprep.subr.mxu0 0.0
    %181 = vmatpush1.msra.mxu0 0.0
    %182 = vmatprep.subr.mxu0 0.0
    %183 = vmatpush1.msra.mxu0 0.0
    %184 = vmatprep.subr.mxu0 0.0
    %185 = vmatpush1.msra.mxu0 0.0
    %186 = vmatprep.subr.mxu0 0.0
    %187 = vmatpush1.msra.mxu0 0.0
    %188 = vmatprep.subr.mxu0 0.0
    %189 = vmatpush1.msra.mxu0 0.0
    %190 = vmatprep.subr.mxu0 0.0
    %191 = vmatpush1.msra.mxu0 0.0
    %192 = vmatprep.subr.mxu0 0.0
    %193 = vmatpush1.msra.mxu0 0.0
    %194 = vmatprep.subr.mxu0 0.0
    %195 = vmatpush1.msra.mxu0 0.0
    %196 = vmatprep.subr.mxu0 0.0
    %197 = vmatpush1.msra.mxu0 0.0
    %198 = vmatprep.subr.mxu0 0.0
    %199 = vmatpush1.msra.mxu0 0.0
    %200 = vmatprep.subr.mxu0 0.0
    %201 = vmatpush1.msra.mxu0 0.0
    %202 = vmatprep.subr.mxu0 0.0
    %203 = vmatpush1.msra.mxu0 0.0
    %204 = vmatprep.subr.mxu0 0.0
    %205 = vmatpush1.msra.mxu0 0.0
    %206 = vmatprep.subr.mxu0 0.0
    %207 = vmatpush1.msra.mxu0 0.0
    %208 = vmatprep.subr.mxu0 0.0
    %209 = vmatpush1.msra.mxu0 0.0
    %210 = vmatprep.subr.mxu0 0.0
    %211 = vmatpush1.msra.mxu0 0.0
    %212 = vmatprep.subr.mxu0 0.0
    %213 = vmatpush1.msra.mxu0 0.0
    %214 = vmatprep.mubr.f32.mxu0 0.0
    %215 = vmatmul.mubr.f32.gmra.mrb[0].mxu0 %v67
    %v216 = vpop.f32.mrb[0].mxu0
    %v217 = vadd.f32 %v61, %v216
    %v218 = vpop.f32.mrb[0].mxu0
    %219 = vdwg.mxu0
    %v220 = vmax.f32 %v146, 0.0
    %v221 = vmax.f32 %v148, 0.0
    %v222 = vmax.f32 %v217, 0.0
    %v223 = vld [vmem:[#allocation2] sm:$0xff]
    %v224 = vld [vmem:[#allocation2 + $0x8] sm:$0xff]
    %v225 = vld [vmem:[#allocation2 + $0x10] sm:$0xff]
    %v226 = vld [vmem:[#allocation2 + $0x18] sm:$0xff]
    %v227 = vld [vmem:[#allocation2 + $0x20] sm:$0xff]
    %v228 = vld [vmem:[#allocation2 + $0x28] sm:$0xff]
    %v229 = vld [vmem:[#allocation2 + $0x30] sm:$0xff]
    %v230 = vld [vmem:[#allocation2 + $0x38] sm:$0xff]
    %v231 = vld [vmem:[#allocation2 + $0x40] sm:$0xff]
    %v232 = vld [vmem:[#allocation2 + $0x48] sm:$0xff]
    %v233 = vld [vmem:[#allocation2 + $0x50] sm:$0xff]
    %v234 = vld [vmem:[#allocation2 + $0x58] sm:$0xff]
    %v235 = vld [vmem:[#allocation2 + $0x60] sm:$0xff]
    %v236 = vld [vmem:[#allocation2 + $0x68] sm:$0xff]
    %v237 = vld [vmem:[#allocation2 + $0x70] sm:$0xff]
    %v238 = vld [vmem:[#allocation2 + $0x78] sm:$0xff]
    %v239 = vld [vmem:[#allocation2 + $0x80] sm:$0xff]
    %v240 = vld [vmem:[#allocation2 + $0x88] sm:$0xff]
    %v241 = vld [vmem:[#allocation2 + $0x90] sm:$0xff]
    %v242 = vld [vmem:[#allocation2 + $0x98] sm:$0xff]
    %v243 = vld [vmem:[#allocation2 + $0xa0] sm:$0xff]
    %v244 = vld [vmem:[#allocation2 + $0xa8] sm:$0xff]
    %v245 = vld [vmem:[#allocation2 + $0xb0] sm:$0xff]
    %v246 = vld [vmem:[#allocation2 + $0xb8] sm:$0xff]
    %v247 = vld [vmem:[#allocation2 + $0xc0] sm:$0xff]
    %v248 = vld [vmem:[#allocation2 + $0xc8] sm:$0xff]
    %v249 = vld [vmem:[#allocation2 + $0xd0] sm:$0xff]
    %v250 = vld [vmem:[#allocation2 + $0xd8] sm:$0xff]
    %v251 = vld [vmem:[#allocation2 + $0xe0] sm:$0xff]
    %v252 = vld [vmem:[#allocation2 + $0xe8] sm:$0xff]
    %v253 = vld [vmem:[#allocation2 + $0xf0] sm:$0xff]
    %v254 = vld [vmem:[#allocation2 + $0xf8] sm:$0xff]
    %v255 = vld [vmem:[#allocation2 + $0x100] sm:$0xff]
    %v256 = vld [vmem:[#allocation2 + $0x108] sm:$0xff]
    %v257 = vld [vmem:[#allocation2 + $0x110] sm:$0xff]
    %v258 = vld [vmem:[#allocation2 + $0x118] sm:$0xff]
    %v259 = vld [vmem:[#allocation2 + $0x120] sm:$0xff]
    %v260 = vld [vmem:[#allocation2 + $0x128] sm:$0xff]
    %v261 = vld [vmem:[#allocation2 + $0x130] sm:$0xff]
    %v262 = vld [vmem:[#allocation2 + $0x138] sm:$0xff]
    %v263 = vld [vmem:[#allocation2 + $0x140] sm:$0xff]
    %v264 = vld [vmem:[#allocation2 + $0x148] sm:$0xff]
    %v265 = vld [vmem:[#allocation2 + $0x150] sm:$0xff]
    %v266 = vld [vmem:[#allocation2 + $0x158] sm:$0xff]
    %v267 = vld [vmem:[#allocation2 + $0x160] sm:$0xff]
    %v268 = vld [vmem:[#allocation2 + $0x168] sm:$0xff]
    %v269 = vld [vmem:[#allocation2 + $0x170] sm:$0xff]
    %v270 = vld [vmem:[#allocation2 + $0x178] sm:$0xff]
    %v271 = vld [vmem:[#allocation2 + $0x180] sm:$0xff]
    %v272 = vld [vmem:[#allocation2 + $0x188] sm:$0xff]
    %v273 = vld [vmem:[#allocation2 + $0x190] sm:$0xff]
    %v274 = vld [vmem:[#allocation2 + $0x198] sm:$0xff]
    %v275 = vld [vmem:[#allocation2 + $0x1a0] sm:$0xff]
    %v276 = vld [vmem:[#allocation2 + $0x1a8] sm:$0xff]
    %v277 = vld [vmem:[#allocation2 + $0x1b0] sm:$0xff]
    %v278 = vld [vmem:[#allocation2 + $0x1b8] sm:$0xff]
    %v279 = vld [vmem:[#allocation2 + $0x1c0] sm:$0xff]
    %v280 = vld [vmem:[#allocation2 + $0x1c8] sm:$0xff]
    %v281 = vld [vmem:[#allocation2 + $0x1d0] sm:$0xff]
    %v282 = vld [vmem:[#allocation2 + $0x1d8] sm:$0xff]
    %v283 = vld [vmem:[#allocation2 + $0x1e0] sm:$0xff]
    %v284 = vld [vmem:[#allocation2 + $0x1e8] sm:$0xff]
    %v285 = vld [vmem:[#allocation2 + $0x1f0] sm:$0xff]
    %v286 = vld [vmem:[#allocation2 + $0x1f8] sm:$0xff]
    %v287 = vld [vmem:[#allocation2 + $0x200] sm:$0xff]
    %v288 = vld [vmem:[#allocation2 + $0x208] sm:$0xff]
    %v289 = vld [vmem:[#allocation2 + $0x210] sm:$0xff]
    %v290 = vld [vmem:[#allocation2 + $0x218] sm:$0xff]
    %v291 = vld [vmem:[#allocation2 + $0x220] sm:$0xff]
    %v292 = vld [vmem:[#allocation2 + $0x228] sm:$0xff]
    %v293 = vld [vmem:[#allocation2 + $0x230] sm:$0xff]
    %v294 = vld [vmem:[#allocation2 + $0x238] sm:$0xff]
    %v295 = vld [vmem:[#allocation2 + $0x240] sm:$0xff]
    %v296 = vld [vmem:[#allocation2 + $0x248] sm:$0xff]
    %v297 = vld [vmem:[#allocation2 + $0x250] sm:$0xff]
    %v298 = vld [vmem:[#allocation2 + $0x258] sm:$0xff]
    %v299 = vld [vmem:[#allocation2 + $0x260] sm:$0xff]
    %v300 = vld [vmem:[#allocation2 + $0x268] sm:$0xff]
    %v301 = vld [vmem:[#allocation2 + $0x270] sm:$0xff]
    %v302 = vld [vmem:[#allocation2 + $0x278] sm:$0xff]
    %v303 = vld [vmem:[#allocation2 + $0x280] sm:$0xff]
    %v304 = vld [vmem:[#allocation2 + $0x288] sm:$0xff]
    %v305 = vld [vmem:[#allocation2 + $0x290] sm:$0xff]
    %v306 = vld [vmem:[#allocation2 + $0x298] sm:$0xff]
    %v307 = vld [vmem:[#allocation2 + $0x2a0] sm:$0xff]
    %v308 = vld [vmem:[#allocation2 + $0x2a8] sm:$0xff]
    %v309 = vld [vmem:[#allocation2 + $0x2b0] sm:$0xff]
    %v310 = vld [vmem:[#allocation2 + $0x2b8] sm:$0xff]
    %v311 = vld [vmem:[#allocation2 + $0x2c0] sm:$0xff]
    %v312 = vld [vmem:[#allocation2 + $0x2c8] sm:$0xff]
    %v313 = vld [vmem:[#allocation2 + $0x2d0] sm:$0xff]
    %v314 = vld [vmem:[#allocation2 + $0x2d8] sm:$0xff]
    %v315 = vld [vmem:[#allocation2 + $0x2e0] sm:$0xff]
    %v316 = vld [vmem:[#allocation2 + $0x2e8] sm:$0xff]
    %v317 = vld [vmem:[#allocation2 + $0x2f0] sm:$0xff]
    %v318 = vld [vmem:[#allocation2 + $0x2f8] sm:$0xff]
    %v319 = vld [vmem:[#allocation2 + $0x300] sm:$0xff]
    %v320 = vld [vmem:[#allocation2 + $0x308] sm:$0xff]
    %v321 = vld [vmem:[#allocation2 + $0x310] sm:$0xff]
    %v322 = vld [vmem:[#allocation2 + $0x318] sm:$0xff]
    %v323 = vld [vmem:[#allocation2 + $0x320] sm:$0xff]
    %v324 = vld [vmem:[#allocation2 + $0x328] sm:$0xff]
    %v325 = vld [vmem:[#allocation2 + $0x330] sm:$0xff]
    %v326 = vld [vmem:[#allocation2 + $0x338] sm:$0xff]
    %v327 = vld [vmem:[#allocation2 + $0x340] sm:$0xff]
    %v328 = vld [vmem:[#allocation2 + $0x348] sm:$0xff]
    %v329 = vld [vmem:[#allocation2 + $0x350] sm:$0xff]
    %v330 = vld [vmem:[#allocation2 + $0x358] sm:$0xff]
    %v331 = vld [vmem:[#allocation2 + $0x360] sm:$0xff]
    %v332 = vld [vmem:[#allocation2 + $0x368] sm:$0xff]
    %v333 = vld [vmem:[#allocation2 + $0x370] sm:$0xff]
    %v334 = vld [vmem:[#allocation2 + $0x378] sm:$0xff]
    %v335 = vld [vmem:[#allocation2 + $0x380] sm:$0xff]
    %v336 = vld [vmem:[#allocation2 + $0x388] sm:$0xff]
    %v337 = vld [vmem:[#allocation2 + $0x390] sm:$0xff]
    %v338 = vld [vmem:[#allocation2 + $0x398] sm:$0xff]
    %v339 = vld [vmem:[#allocation2 + $0x3a0] sm:$0xff]
    %v340 = vld [vmem:[#allocation2 + $0x3a8] sm:$0xff]
    %v341 = vld [vmem:[#allocation2 + $0x3b0] sm:$0xff]
    %v342 = vld [vmem:[#allocation2 + $0x3b8] sm:$0xff]
    %v343 = vld [vmem:[%s4] sm:$0x7]
    %v345 = vlaneseq
    %v346 = vshrl.u32 %v345, 7
    %v347 = vsub.s32 0, %v346
    %v348 = vrot.slane %v343, %v347
    %v349 = vlaneseq
    %v350 = vshrl.u32 %v349, 7
    %v351 = vsub.s32 1, %v350
    %v352 = vrot.slane %v343, %v351
    %v353 = vlaneseq
    %v354 = vshrl.u32 %v353, 7
    %v355 = vsub.s32 2, %v354
    %v356 = vrot.slane %v343, %v355
    %vm360 = vcmask 523264
    %v362 = vsel %vm360, %v222, 0
    %364 = vmatprep.subr.mxu0 %v224
    %365 = vmatpush1.msra.mxu0 %v223
    %366 = vmatprep.subr.mxu0 %v227
    %367 = vmatpush1.msra.mxu0 %v226
    %368 = vmatprep.subr.mxu0 %v230
    %369 = vmatpush1.msra.mxu0 %v229
    %370 = vmatprep.subr.mxu0 %v233
    %371 = vmatpush1.msra.mxu0 %v232
    %372 = vmatprep.subr.mxu0 %v236
    %373 = vmatpush1.msra.mxu0 %v235
    %374 = vmatprep.subr.mxu0 %v239
    %375 = vmatpush1.msra.mxu0 %v238
    %376 = vmatprep.subr.mxu0 %v242
    %377 = vmatpush1.msra.mxu0 %v241
    %378 = vmatprep.subr.mxu0 %v245
    %379 = vmatpush1.msra.mxu0 %v244
    %380 = vmatprep.subr.mxu0 %v248
    %381 = vmatpush1.msra.mxu0 %v247
    %382 = vmatprep.subr.mxu0 %v251
    %383 = vmatpush1.msra.mxu0 %v250
    %384 = vmatprep.subr.mxu0 %v254
    %385 = vmatpush1.msra.mxu0 %v253
    %386 = vmatprep.subr.mxu0 %v257
    %387 = vmatpush1.msra.mxu0 %v256
    %388 = vmatprep.subr.mxu0 %v260
    %389 = vmatpush1.msra.mxu0 %v259
    %390 = vmatprep.subr.mxu0 %v263
    %391 = vmatpush1.msra.mxu0 %v262
    %392 = vmatprep.subr.mxu0 %v266
    %393 = vmatpush1.msra.mxu0 %v265
    %394 = vmatprep.subr.mxu0 %v269
    %395 = vmatpush1.msra.mxu0 %v268
    %396 = vmatprep.subr.mxu0 %v272
    %397 = vmatpush1.msra.mxu0 %v271
    %398 = vmatprep.subr.mxu0 %v275
    %399 = vmatpush1.msra.mxu0 %v274
    %400 = vmatprep.subr.mxu0 %v278
    %401 = vmatpush1.msra.mxu0 %v277
    %402 = vmatprep.subr.mxu0 %v281
    %403 = vmatpush1.msra.mxu0 %v280
    %404 = vmatprep.subr.mxu0 %v284
    %405 = vmatpush1.msra.mxu0 %v283
    %406 = vmatprep.subr.mxu0 %v287
    %407 = vmatpush1.msra.mxu0 %v286
    %408 = vmatprep.subr.mxu0 %v290
    %409 = vmatpush1.msra.mxu0 %v289
    %410 = vmatprep.subr.mxu0 %v293
    %411 = vmatpush1.msra.mxu0 %v292
    %412 = vmatprep.subr.mxu0 %v296
    %413 = vmatpush1.msra.mxu0 %v295
    %414 = vmatprep.subr.mxu0 %v299
    %415 = vmatpush1.msra.mxu0 %v298
    %416 = vmatprep.subr.mxu0 %v302
    %417 = vmatpush1.msra.mxu0 %v301
    %418 = vmatprep.subr.mxu0 %v305
    %419 = vmatpush1.msra.mxu0 %v304
    %420 = vmatprep.subr.mxu0 %v308
    %421 = vmatpush1.msra.mxu0 %v307
    %422 = vmatprep.subr.mxu0 %v311
    %423 = vmatpush1.msra.mxu0 %v310
    %424 = vmatprep.subr.mxu0 %v314
    %425 = vmatpush1.msra.mxu0 %v313
    %426 = vmatprep.subr.mxu0 %v317
    %427 = vmatpush1.msra.mxu0 %v316
    %428 = vmatprep.mubr.f32.mxu0 %v221
    %429 = vmatmul.mubr.f32.gmra.mrb[0].mxu0 %v220
    %v430 = vpop.f32.mrb[0].mxu0
    %v431 = vadd.f32 %v348, %v430
    %v432 = vpop.f32.mrb[0].mxu0
    %v433 = vadd.f32 %v352, %v432
    %434 = vdwg.mxu0
    %435 = vmatprep.subr.mxu0 %v320
    %436 = vmatpush1.msra.mxu0 %v319
    %437 = vmatprep.subr.mxu0 %v323
    %438 = vmatpush1.msra.mxu0 %v322
    %439 = vmatprep.subr.mxu0 %v326
    %440 = vmatpush1.msra.mxu0 %v325
    %441 = vmatprep.subr.mxu0 %v329
    %442 = vmatpush1.msra.mxu0 %v328
    %443 = vmatprep.subr.mxu0 %v332
    %444 = vmatpush1.msra.mxu0 %v331
    %445 = vmatprep.subr.mxu0 %v335
    %446 = vmatpush1.msra.mxu0 %v334
    %447 = vmatprep.subr.mxu0 %v338
    %448 = vmatpush1.msra.mxu0 %v337
    %449 = vmatprep.subr.mxu0 %v341
    %450 = vmatpush1.msra.mxu0 %v340
    %451 = vmatprep.subr.mxu0 0.0
    %452 = vmatpush1.msra.mxu0 0.0
    %453 = vmatprep.subr.mxu0 0.0
    %454 = vmatpush1.msra.mxu0 0.0
    %455 = vmatprep.subr.mxu0 0.0
    %456 = vmatpush1.msra.mxu0 0.0
    %457 = vmatprep.subr.mxu0 0.0
    %458 = vmatpush1.msra.mxu0 0.0
    %459 = vmatprep.subr.mxu0 0.0
    %460 = vmatpush1.msra.mxu0 0.0
    %461 = vmatprep.subr.mxu0 0.0
    %462 = vmatpush1.msra.mxu0 0.0
    %463 = vmatprep.subr.mxu0 0.0
    %464 = vmatpush1.msra.mxu0 0.0
    %465 = vmatprep.subr.mxu0 0.0
    %466 = vmatpush1.msra.mxu0 0.0
    %467 = vmatprep.subr.mxu0 0.0
    %468 = vmatpush1.msra.mxu0 0.0
    %469 = vmatprep.subr.mxu0 0.0
    %470 = vmatpush1.msra.mxu0 0.0
    %471 = vmatprep.subr.mxu0 0.0
    %472 = vmatpush1.msra.mxu0 0.0
    %473 = vmatprep.subr.mxu0 0.0
    %474 = vmatpush1.msra.mxu0 0.0
    %475 = vmatprep.subr.mxu0 0.0
    %476 = vmatpush1.msra.mxu0 0.0
    %477 = vmatprep.subr.mxu0 0.0
    %478 = vmatpush1.msra.mxu0 0.0
    %479 = vmatprep.subr.mxu0 0.0
    %480 = vmatpush1.msra.mxu0 0.0
    %481 = vmatprep.subr.mxu0 0.0
    %482 = vmatpush1.msra.mxu0 0.0
    %483 = vmatprep.subr.mxu0 0.0
    %484 = vmatpush1.msra.mxu0 0.0
    %485 = vmatprep.subr.mxu0 0.0
    %486 = vmatpush1.msra.mxu0 0.0
    %487 = vmatprep.subr.mxu0 0.0
    %488 = vmatpush1.msra.mxu0 0.0
    %489 = vmatprep.subr.mxu0 0.0
    %490 = vmatpush1.msra.mxu0 0.0
    %491 = vmatprep.subr.mxu0 0.0
    %492 = vmatpush1.msra.mxu0 0.0
    %493 = vmatprep.subr.mxu0 0.0
    %494 = vmatpush1.msra.mxu0 0.0
    %495 = vmatprep.subr.mxu0 0.0
    %496 = vmatpush1.msra.mxu0 0.0
    %497 = vmatprep.subr.mxu0 0.0
    %498 = vmatpush1.msra.mxu0 0.0
    %499 = vmatprep.mubr.f32.mxu0 0.0
    %500 = vmatmul.mubr.f32.gmra.mrb[0].mxu0 %v362
    %v501 = vpop.f32.mrb[0].mxu0
    %v502 = vadd.f32 %v431, %v501
    %v503 = vpop.f32.mrb[0].mxu0
    %v504 = vadd.f32 %v433, %v503
    %505 = vdwg.mxu0
    %506 = vmatprep.subr.mxu0 0.0
    %507 = vmatpush1.msra.mxu0 %v225
    %508 = vmatprep.subr.mxu0 0.0
    %509 = vmatpush1.msra.mxu0 %v228
    %510 = vmatprep.subr.mxu0 0.0
    %511 = vmatpush1.msra.mxu0 %v231
    %512 = vmatprep.subr.mxu0 0.0
    %513 = vmatpush1.msra.mxu0 %v234
    %514 = vmatprep.subr.mxu0 0.0
    %515 = vmatpush1.msra.mxu0 %v237
    %516 = vmatprep.subr.mxu0 0.0
    %517 = vmatpush1.msra.mxu0 %v240
    %518 = vmatprep.subr.mxu0 0.0
    %519 = vmatpush1.msra.mxu0 %v243
    %520 = vmatprep.subr.mxu0 0.0
    %521 = vmatpush1.msra.mxu0 %v246
    %522 = vmatprep.subr.mxu0 0.0
    %523 = vmatpush1.msra.mxu0 %v249
    %524 = vmatprep.subr.mxu0 0.0
    %525 = vmatpush1.msra.mxu0 %v252
    %526 = vmatprep.subr.mxu0 0.0
    %527 = vmatpush1.msra.mxu0 %v255
    %528 = vmatprep.subr.mxu0 0.0
    %529 = vmatpush1.msra.mxu0 %v258
    %530 = vmatprep.subr.mxu0 0.0
    %531 = vmatpush1.msra.mxu0 %v261
    %532 = vmatprep.subr.mxu0 0.0
    %533 = vmatpush1.msra.mxu0 %v264
    %534 = vmatprep.subr.mxu0 0.0
    %535 = vmatpush1.msra.mxu0 %v267
    %536 = vmatprep.subr.mxu0 0.0
    %537 = vmatpush1.msra.mxu0 %v270
    %538 = vmatprep.subr.mxu0 0.0
    %539 = vmatpush1.msra.mxu0 %v273
    %540 = vmatprep.subr.mxu0 0.0
    %541 = vmatpush1.msra.mxu0 %v276
    %542 = vmatprep.subr.mxu0 0.0
    %543 = vmatpush1.msra.mxu0 %v279
    %544 = vmatprep.subr.mxu0 0.0
    %545 = vmatpush1.msra.mxu0 %v282
    %546 = vmatprep.subr.mxu0 0.0
    %547 = vmatpush1.msra.mxu0 %v285
    %548 = vmatprep.subr.mxu0 0.0
    %549 = vmatpush1.msra.mxu0 %v288
    %550 = vmatprep.subr.mxu0 0.0
    %551 = vmatpush1.msra.mxu0 %v291
    %552 = vmatprep.subr.mxu0 0.0
    %553 = vmatpush1.msra.mxu0 %v294
    %554 = vmatprep.subr.mxu0 0.0
    %555 = vmatpush1.msra.mxu0 %v297
    %556 = vmatprep.subr.mxu0 0.0
    %557 = vmatpush1.msra.mxu0 %v300
    %558 = vmatprep.subr.mxu0 0.0
    %559 = vmatpush1.msra.mxu0 %v303
    %560 = vmatprep.subr.mxu0 0.0
    %561 = vmatpush1.msra.mxu0 %v306
    %562 = vmatprep.subr.mxu0 0.0
    %563 = vmatpush1.msra.mxu0 %v309
    %564 = vmatprep.subr.mxu0 0.0
    %565 = vmatpush1.msra.mxu0 %v312
    %566 = vmatprep.subr.mxu0 0.0
    %567 = vmatpush1.msra.mxu0 %v315
    %568 = vmatprep.subr.mxu0 0.0
    %569 = vmatpush1.msra.mxu0 %v318
    %570 = vmatprep.mubr.f32.mxu0 %v221
    %571 = vmatmul.mubr.f32.gmra.mrb[0].mxu0 %v220
    %v572 = vpop.f32.mrb[0].mxu0
    %v573 = vadd.f32 %v356, %v572
    %v574 = vpop.f32.mrb[0].mxu0
    %575 = vdwg.mxu0
    %576 = vmatprep.subr.mxu0 0.0
    %577 = vmatpush1.msra.mxu0 %v321
    %578 = vmatprep.subr.mxu0 0.0
    %579 = vmatpush1.msra.mxu0 %v324
    %580 = vmatprep.subr.mxu0 0.0
    %581 = vmatpush1.msra.mxu0 %v327
    %582 = vmatprep.subr.mxu0 0.0
    %583 = vmatpush1.msra.mxu0 %v330
    %584 = vmatprep.subr.mxu0 0.0
    %585 = vmatpush1.msra.mxu0 %v333
    %586 = vmatprep.subr.mxu0 0.0
    %587 = vmatpush1.msra.mxu0 %v336
    %588 = vmatprep.subr.mxu0 0.0
    %589 = vmatpush1.msra.mxu0 %v339
    %590 = vmatprep.subr.mxu0 0.0
    %591 = vmatpush1.msra.mxu0 %v342
    %592 = vmatprep.subr.mxu0 0.0
    %593 = vmatpush1.msra.mxu0 0.0
    %594 = vmatprep.subr.mxu0 0.0
    %595 = vmatpush1.msra.mxu0 0.0
    %596 = vmatprep.subr.mxu0 0.0
    %597 = vmatpush1.msra.mxu0 0.0
    %598 = vmatprep.subr.mxu0 0.0
    %599 = vmatpush1.msra.mxu0 0.0
    %600 = vmatprep.subr.mxu0 0.0
    %601 = vmatpush1.msra.mxu0 0.0
    %602 = vmatprep.subr.mxu0 0.0
    %603 = vmatpush1.msra.mxu0 0.0
    %604 = vmatprep.subr.mxu0 0.0
    %605 = vmatpush1.msra.mxu0 0.0
    %606 = vmatprep.subr.mxu0 0.0
    %607 = vmatpush1.msra.mxu0 0.0
    %608 = vmatprep.subr.mxu0 0.0
    %609 = vmatpush1.msra.mxu0 0.0
    %610 = vmatprep.subr.mxu0 0.0
    %611 = vmatpush1.msra.mxu0 0.0
    %612 = vmatprep.subr.mxu0 0.0
    %613 = vmatpush1.msra.mxu0 0.0
    %614 = vmatprep.subr.mxu0 0.0
    %615 = vmatpush1.msra.mxu0 0.0
    %616 = vmatprep.subr.mxu0 0.0
    %617 = vmatpush1.msra.mxu0 0.0
    %618 = vmatprep.subr.mxu0 0.0
    %619 = vmatpush1.msra.mxu0 0.0
    %620 = vmatprep.subr.mxu0 0.0
    %621 = vmatpush1.msra.mxu0 0.0
    %622 = vmatprep.subr.mxu0 0.0
    %623 = vmatpush1.msra.mxu0 0.0
    %624 = vmatprep.subr.mxu0 0.0
    %625 = vmatpush1.msra.mxu0 0.0
    %626 = vmatprep.subr.mxu0 0.0
    %627 = vmatpush1.msra.mxu0 0.0
    %628 = vmatprep.subr.mxu0 0.0
    %629 = vmatpush1.msra.mxu0 0.0
    %630 = vmatprep.subr.mxu0 0.0
    %631 = vmatpush1.msra.mxu0 0.0
    %632 = vmatprep.subr.mxu0 0.0
    %633 = vmatpush1.msra.mxu0 0.0
    %634 = vmatprep.subr.mxu0 0.0
    %635 = vmatpush1.msra.mxu0 0.0
    %636 = vmatprep.subr.mxu0 0.0
    %637 = vmatpush1.msra.mxu0 0.0
    %638 = vmatprep.subr.mxu0 0.0
    %639 = vmatpush1.msra.mxu0 0.0
    %640 = vmatprep.mubr.f32.mxu0 0.0
    %641 = vmatmul.mubr.f32.gmra.mrb[0].mxu0 %v362
    %v642 = vpop.f32.mrb[0].mxu0
    %v643 = vadd.f32 %v573, %v642
    %v644 = vpop.f32.mrb[0].mxu0
    %645 = vdwg.mxu0
    %v646 = vmax.f32 %v502, 0.0
    %v647 = vmax.f32 %v504, 0.0
    %v648 = vmax.f32 %v643, 0.0
    %v649 = vld [vmem:[%s5] sm:$0xff]
    %v650 = vld [vmem:[%s5 + $0x8] sm:$0xff]
    %v651 = vld [vmem:[%s5 + $0x10] sm:$0xff]
    %v652 = vld [vmem:[%s5 + $0x18] sm:$0xff]
    %v653 = vld [vmem:[%s5 + $0x20] sm:$0xff]
    %v654 = vld [vmem:[%s5 + $0x28] sm:$0xff]
    %v655 = vld [vmem:[%s5 + $0x30] sm:$0xff]
    %v656 = vld [vmem:[%s5 + $0x38] sm:$0xff]
    %v657 = vld [vmem:[%s5 + $0x40] sm:$0xff]
    %v658 = vld [vmem:[%s5 + $0x48] sm:$0xff]
    %v659 = vld [vmem:[%s5 + $0x50] sm:$0xff]
    %v660 = vld [vmem:[%s5 + $0x58] sm:$0xff]
    %v661 = vld [vmem:[%s5 + $0x60] sm:$0xff]
    %v662 = vld [vmem:[%s5 + $0x68] sm:$0xff]
    %v663 = vld [vmem:[%s5 + $0x70] sm:$0xff]
    %v664 = vld [vmem:[%s5 + $0x78] sm:$0xff]
    %v665 = vld [vmem:[%s5 + $0x80] sm:$0xff]
    %v666 = vld [vmem:[%s5 + $0x88] sm:$0xff]
    %v667 = vld [vmem:[%s5 + $0x90] sm:$0xff]
    %v668 = vld [vmem:[%s5 + $0x98] sm:$0xff]
    %v669 = vld [vmem:[%s5 + $0xa0] sm:$0xff]
    %v670 = vld [vmem:[%s5 + $0xa8] sm:$0xff]
    %v671 = vld [vmem:[%s5 + $0xb0] sm:$0xff]
    %v672 = vld [vmem:[%s5 + $0xb8] sm:$0xff]
    %v673 = vld [vmem:[%s5 + $0xc0] sm:$0xff]
    %v674 = vld [vmem:[%s5 + $0xc8] sm:$0xff]
    %v675 = vld [vmem:[%s5 + $0xd0] sm:$0xff]
    %v676 = vld [vmem:[%s5 + $0xd8] sm:$0xff]
    %v677 = vld [vmem:[%s5 + $0xe0] sm:$0xff]
    %v678 = vld [vmem:[%s5 + $0xe8] sm:$0xff]
    %v679 = vld [vmem:[%s5 + $0xf0] sm:$0xff]
    %v680 = vld [vmem:[%s5 + $0xf8] sm:$0xff]
    %v681 = vld [vmem:[%s5 + $0x100] sm:$0xff]
    %v682 = vld [vmem:[%s5 + $0x108] sm:$0xff]
    %v683 = vld [vmem:[%s5 + $0x110] sm:$0xff]
    %v684 = vld [vmem:[%s5 + $0x118] sm:$0xff]
    %v685 = vld [vmem:[%s5 + $0x120] sm:$0xff]
    %v686 = vld [vmem:[%s5 + $0x128] sm:$0xff]
    %v687 = vld [vmem:[%s5 + $0x130] sm:$0xff]
    %v688 = vld [vmem:[%s5 + $0x138] sm:$0xff]
    %v689 = vld [vmem:[%s6] sm:$0x1]
    %v691 = vlaneseq
    %v692 = vshrl.u32 %v691, 7
    %v693 = vsub.s32 0, %v692
    %v694 = vrot.slane %v689, %v693
    %v697 = vsel %vm360, %v648, 0
    %699 = vmatprep.subr.mxu0 0.0
    %700 = vmatpush1.msra.mxu0 %v649
    %701 = vmatprep.subr.mxu0 0.0
    %702 = vmatpush1.msra.mxu0 %v650
    %703 = vmatprep.subr.mxu0 0.0
    %704 = vmatpush1.msra.mxu0 %v651
    %705 = vmatprep.subr.mxu0 0.0
    %706 = vmatpush1.msra.mxu0 %v652
    %707 = vmatprep.subr.mxu0 0.0
    %708 = vmatpush1.msra.mxu0 %v653
    %709 = vmatprep.subr.mxu0 0.0
    %710 = vmatpush1.msra.mxu0 %v654
    %711 = vmatprep.subr.mxu0 0.0
    %712 = vmatpush1.msra.mxu0 %v655
    %713 = vmatprep.subr.mxu0 0.0
    %714 = vmatpush1.msra.mxu0 %v656
    %715 = vmatprep.subr.mxu0 0.0
    %716 = vmatpush1.msra.mxu0 %v657
    %717 = vmatprep.subr.mxu0 0.0
    %718 = vmatpush1.msra.mxu0 %v658
    %719 = vmatprep.subr.mxu0 0.0
    %720 = vmatpush1.msra.mxu0 %v659
    %721 = vmatprep.subr.mxu0 0.0
    %722 = vmatpush1.msra.mxu0 %v660
    %723 = vmatprep.subr.mxu0 0.0
    %724 = vmatpush1.msra.mxu0 %v661
    %725 = vmatprep.subr.mxu0 0.0
    %726 = vmatpush1.msra.mxu0 %v662
    %727 = vmatprep.subr.mxu0 0.0
    %728 = vmatpush1.msra.mxu0 %v663
    %729 = vmatprep.subr.mxu0 0.0
    %730 = vmatpush1.msra.mxu0 %v664
    %731 = vmatprep.subr.mxu0 0.0
    %732 = vmatpush1.msra.mxu0 %v665
    %733 = vmatprep.subr.mxu0 0.0
    %734 = vmatpush1.msra.mxu0 %v666
    %735 = vmatprep.subr.mxu0 0.0
    %736 = vmatpush1.msra.mxu0 %v667
    %737 = vmatprep.subr.mxu0 0.0
    %738 = vmatpush1.msra.mxu0 %v668
    %739 = vmatprep.subr.mxu0 0.0
    %740 = vmatpush1.msra.mxu0 %v669
    %741 = vmatprep.subr.mxu0 0.0
    %742 = vmatpush1.msra.mxu0 %v670
    %743 = vmatprep.subr.mxu0 0.0
    %744 = vmatpush1.msra.mxu0 %v671
    %745 = vmatprep.subr.mxu0 0.0
    %746 = vmatpush1.msra.mxu0 %v672
    %747 = vmatprep.subr.mxu0 0.0
    %748 = vmatpush1.msra.mxu0 %v673
    %749 = vmatprep.subr.mxu0 0.0
    %750 = vmatpush1.msra.mxu0 %v674
    %751 = vmatprep.subr.mxu0 0.0
    %752 = vmatpush1.msra.mxu0 %v675
    %753 = vmatprep.subr.mxu0 0.0
    %754 = vmatpush1.msra.mxu0 %v676
    %755 = vmatprep.subr.mxu0 0.0
    %756 = vmatpush1.msra.mxu0 %v677
    %757 = vmatprep.subr.mxu0 0.0
    %758 = vmatpush1.msra.mxu0 %v678
    %759 = vmatprep.subr.mxu0 0.0
    %760 = vmatpush1.msra.mxu0 %v679
    %761 = vmatprep.subr.mxu0 0.0
    %762 = vmatpush1.msra.mxu0 %v680
    %763 = vmatprep.mubr.f32.mxu0 %v647
    %764 = vmatmul.mubr.f32.gmra.mrb[0].mxu0 %v646
    %v765 = vpop.f32.mrb[0].mxu0
    %v766 = vadd.f32 %v694, %v765
    %v767 = vpop.f32.mrb[0].mxu0
    %768 = vdwg.mxu0
    %769 = vmatprep.subr.mxu0 0.0
    %770 = vmatpush1.msra.mxu0 %v681
    %771 = vmatprep.subr.mxu0 0.0
    %772 = vmatpush1.msra.mxu0 %v682
    %773 = vmatprep.subr.mxu0 0.0
    %774 = vmatpush1.msra.mxu0 %v683
    %775 = vmatprep.subr.mxu0 0.0
    %776 = vmatpush1.msra.mxu0 %v684
    %777 = vmatprep.subr.mxu0 0.0
    %778 = vmatpush1.msra.mxu0 %v685
    %779 = vmatprep.subr.mxu0 0.0
    %780 = vmatpush1.msra.mxu0 %v686
    %781 = vmatprep.subr.mxu0 0.0
    %782 = vmatpush1.msra.mxu0 %v687
    %783 = vmatprep.subr.mxu0 0.0
    %784 = vmatpush1.msra.mxu0 %v688
    %785 = vmatprep.subr.mxu0 0.0
    %786 = vmatpush1.msra.mxu0 0.0
    %787 = vmatprep.subr.mxu0 0.0
    %788 = vmatpush1.msra.mxu0 0.0
    %789 = vmatprep.subr.mxu0 0.0
    %790 = vmatpush1.msra.mxu0 0.0
    %791 = vmatprep.subr.mxu0 0.0
    %792 = vmatpush1.msra.mxu0 0.0
    %793 = vmatprep.subr.mxu0 0.0
    %794 = vmatpush1.msra.mxu0 0.0
    %795 = vmatprep.subr.mxu0 0.0
    %796 = vmatpush1.msra.mxu0 0.0
    %797 = vmatprep.subr.mxu0 0.0
    %798 = vmatpush1.msra.mxu0 0.0
    %799 = vmatprep.subr.mxu0 0.0
    %800 = vmatpush1.msra.mxu0 0.0
    %801 = vmatprep.subr.mxu0 0.0
    %802 = vmatpush1.msra.mxu0 0.0
    %803 = vmatprep.subr.mxu0 0.0
    %804 = vmatpush1.msra.mxu0 0.0
    %805 = vmatprep.subr.mxu0 0.0
    %806 = vmatpush1.msra.mxu0 0.0
    %807 = vmatprep.subr.mxu0 0.0
    %808 = vmatpush1.msra.mxu0 0.0
    %809 = vmatprep.subr.mxu0 0.0
    %810 = vmatpush1.msra.mxu0 0.0
    %811 = vmatprep.subr.mxu0 0.0
    %812 = vmatpush1.msra.mxu0 0.0
    %813 = vmatprep.subr.mxu0 0.0
    %814 = vmatpush1.msra.mxu0 0.0
    %815 = vmatprep.subr.mxu0 0.0
    %816 = vmatpush1.msra.mxu0 0.0
    %817 = vmatprep.subr.mxu0 0.0
    %818 = vmatpush1.msra.mxu0 0.0
    %819 = vmatprep.subr.mxu0 0.0
    %820 = vmatpush1.msra.mxu0 0.0
    %821 = vmatprep.subr.mxu0 0.0
    %822 = vmatpush1.msra.mxu0 0.0
    %823 = vmatprep.subr.mxu0 0.0
    %824 = vmatpush1.msra.mxu0 0.0
    %825 = vmatprep.subr.mxu0 0.0
    %826 = vmatpush1.msra.mxu0 0.0
    %827 = vmatprep.subr.mxu0 0.0
    %828 = vmatpush1.msra.mxu0 0.0
    %829 = vmatprep.subr.mxu0 0.0
    %830 = vmatpush1.msra.mxu0 0.0
    %831 = vmatprep.subr.mxu0 0.0
    %832 = vmatpush1.msra.mxu0 0.0
    %833 = vmatprep.mubr.f32.mxu0 0.0
    %834 = vmatmul.mubr.f32.gmra.mrb[0].mxu0 %v697
    %v835 = vpop.f32.mrb[0].mxu0
    %v836 = vadd.f32 %v766, %v835
    %v837 = vpop.f32.mrb[0].mxu0
    %838 = vdwg.mxu0
    %vm839 = vcmask 80896
    %840 = vst.msk [vmem:[#allocation5] sm:$0xff] %vm839, %v836
    // Predicated region
    $region34: #{tpu_custom_call.1} parent=1 // pred_check
      _
    $region35: #{tpu_custom_call.1} parent=1 // pred_check_branch
      %842 = sbr.rel (0) target = $region37
    $region36: #{tpu_custom_call.1} parent=1 // pred_region
      %s844 = ssub.s32 128, 128
      %845 = vsyncadd [#allocation4], %s844
      %s847 = sshll.u32 [#allocation5], 4
      %s848 = int_to_ptr.vmem [resolvable:$true] %s847
      %850 = dma.vmem_to_hbm [thread:$0]  %s848, 128, %s7, [#allocation4]
    $region37: #{tpu_custom_call.1} parent=1 // pred_fallthru
      _
    // Predicated region
    $region38: #{tpu_custom_call.1} parent=1 // pred_check
      _
    $region39: #{tpu_custom_call.1} parent=1 // pred_check_branch
      %852 = sbr.rel (0) target = $region41
    $region40: #{tpu_custom_call.1} parent=1 // pred_region
      %853 = dma.done [#allocation4], 128
    $region41: #{tpu_custom_call.1} parent=1 // pred_fallthru
      _
    %854 = vsyncpa [#allocation3], 1
    %855 = vsyncpa [#allocation4], 1

</llo_original>
